<compile_context>
chip_gen: v7x
topology: tpu7x:2x2x1
jax: 0.10.0
libtpu: 0.0.40
codegen_flags: <defaults>
</compile_context>

<pallas_src>
import functools

import jax
import jax.numpy as jnp
from jax.experimental import pallas as pl
from jax.experimental.pallas import tpu as pltpu


def _attention_kernel(x_ref, w_in_ref, b_in_ref, w_out_ref, out_ref, *, mxu_dtype):
    bt, s, d = x_ref.shape
    x3 = x_ref[...]                                   # (Bt, S, D), f32
    x2 = x3.reshape(bt * s, d)                        # flatten batch into MXU M dim

    if mxu_dtype is not None:
        lhs = x2.astype(mxu_dtype)
        rhs = w_in_ref[...].astype(mxu_dtype)
    else:
        lhs = x2
        rhs = w_in_ref[...]

    # linear_in + tanh: one (Bt*S, D) @ (D, H) MXU pass, f32 accumulation.
    energy = jnp.tanh(
        jnp.dot(lhs, rhs, preferred_element_type=jnp.float32)
        + b_in_ref[...]                               # (1, H) broadcast
    )                                                 # (Bt*S, H)

    # linear_out (output width 1): VPU multiply + lane reduce instead of an
    # MXU matmul with a 1-wide result. b_out omitted (softmax shift-invariant).
    logits = jnp.sum(energy * w_out_ref[...], axis=-1, keepdims=True)  # (Bt*S, 1)
    logits = logits.reshape(bt, s, 1)                 # per-batch view

    # softmax over the sequence axis, normalization folded into the final scale.
    m = jnp.max(logits, axis=1, keepdims=True)        # (Bt, 1, 1)
    e = jnp.exp(logits - m)                           # (Bt, S, 1)
    num = jnp.sum(e * x3, axis=1)                     # (Bt, D)  unnormalized context
    den = jnp.sum(e, axis=1)                          # (Bt, 1)
    out_ref[...] = (num * pl.reciprocal(den, approx=False)).astype(out_ref.dtype)


def attention_forward(x, w_in, b_in, w_out, b_out=None, *,
                      batch_tile=None, mxu_dtype=None):
    """x: (B, S, D); w_in: (D, H); b_in: (H,); w_out: (H, 1); b_out: (1,) (unused:
    softmax is invariant to a scalar logit shift, so it is dropped in-kernel)."""
    del b_out  # mathematically a no-op under the softmax
    B, S, D = x.shape
    H = w_in.shape[1]

    if batch_tile is None:
        # Largest convenient divisor of B: batches rows per grid step so the
        # first matmul's M dim (Bt*S) approaches MXU-native size and the output
        # block is sublane-dense. Toy B collapses to a single grid step.
        batch_tile = next(bt for bt in (32, 16, 8, 4, 2, 1) if B % bt == 0)
    assert B % batch_tile == 0
    grid = (B // batch_tile,)

    b_in2 = b_in.reshape(1, H)
    w_out_row = w_out.reshape(1, H)                   # lane-dense row for VPU path

    kernel = functools.partial(_attention_kernel, mxu_dtype=mxu_dtype)

    return pl.pallas_call(
        kernel,
        out_shape=jax.ShapeDtypeStruct((B, D), x.dtype),
        grid_spec=pltpu.PrefetchScalarGridSpec(
            num_scalar_prefetch=0,
            grid=grid,
            in_specs=[
                pl.BlockSpec((batch_tile, S, D), lambda b: (b, 0, 0)),  # x tile
                pl.BlockSpec((D, H), lambda b: (0, 0)),                 # W_in
                pl.BlockSpec((1, H), lambda b: (0, 0)),                 # b_in
                pl.BlockSpec((1, H), lambda b: (0, 0)),                 # W_out row
            ],
            out_specs=pl.BlockSpec((batch_tile, D), lambda b: (b, 0)),  # dense (Bt, D)
        ),
        compiler_params=pltpu.CompilerParams(
            dimension_semantics=("parallel",),
        ),
    )(x, w_in, b_in2, w_out_row)


def attention_reference(x, w_in, b_in, w_out, b_out):
    energy = jnp.tanh(jnp.einsum("bsd,dh->bsh", x, w_in) + b_in)
    logits = jnp.einsum("bsh,ho->bso", energy, w_out) + b_out
    scores = jax.nn.softmax(logits, axis=1)
    return jnp.sum(scores * x, axis=1)


if __name__ == "__main__":
    B, S, D, H = 2, 8, 32, 32   # batch, seq, input_dim, hidden_dim

    key = jax.random.PRNGKey(0)
    kx, kw1, kb1, kw2, kb2 = jax.random.split(key, 5)

    x = jax.random.normal(kx, (B, S, D), dtype=jnp.float32)
    # Deterministic parameter init (uniform, torch-Linear-like scale).
    w_in = jax.random.uniform(kw1, (D, H), dtype=jnp.float32,
                              minval=-1.0 / jnp.sqrt(D), maxval=1.0 / jnp.sqrt(D))
    b_in = jax.random.uniform(kb1, (H,), dtype=jnp.float32,
                              minval=-1.0 / jnp.sqrt(D), maxval=1.0 / jnp.sqrt(D))
    w_out = jax.random.uniform(kw2, (H, 1), dtype=jnp.float32,
                               minval=-1.0 / jnp.sqrt(H), maxval=1.0 / jnp.sqrt(H))
    b_out = jax.random.uniform(kb2, (1,), dtype=jnp.float32,
                               minval=-1.0 / jnp.sqrt(H), maxval=1.0 / jnp.sqrt(H))

    out = attention_forward(x, w_in, b_in, w_out, b_out)
    out = jax.block_until_ready(out)

    ref = attention_reference(x, w_in, b_in, w_out, b_out)
    assert out.shape == (B, D), out.shape
    assert jnp.allclose(out, ref, atol=1e-5, rtol=1e-5), (
        float(jnp.max(jnp.abs(out - ref)))
    )

    print("KERNEL_OK")
</pallas_src>

<mosaic_0001>
module attributes {stable_mosaic.version = 11 : i64} {
  func.func @_attention_kernel(%arg0: i32, %arg1: memref<2x8x32xf32, #tpu.memory_space<vmem>>, %arg2: memref<32x32xf32, #tpu.memory_space<vmem>>, %arg3: memref<1x32xf32, #tpu.memory_space<vmem>>, %arg4: memref<1x32xf32, #tpu.memory_space<vmem>>, %arg5: memref<2x32xf32, #tpu.memory_space<vmem>>) attributes {dimension_semantics = [#tpu.dimension_semantics<parallel>], iteration_bounds = array<i64: 1>, scalar_prefetch = 0 : i64, scratch_operands = 0 : i64, tpu.core_type = #tpu.core_type<tc>, window_params = [{transform_indices = @transform_0, window_bounds = array<i64: 2, 8, 32>}, {pipeline_mode = #tpu.pipeline_mode<synchronous>, transform_indices = @transform_1, window_bounds = array<i64: 32, 32>}, {pipeline_mode = #tpu.pipeline_mode<synchronous>, transform_indices = @transform_2, window_bounds = array<i64: 1, 32>}, {pipeline_mode = #tpu.pipeline_mode<synchronous>, transform_indices = @transform_3, window_bounds = array<i64: 1, 32>}, {transform_indices = @transform_4, window_bounds = array<i64: 2, 32>}]} {
    %c0 = arith.constant 0 : index
    %c0_0 = arith.constant 0 : index
    %c0_1 = arith.constant 0 : index
    %0 = vector.load %arg1[%c0, %c0_0, %c0_1] : memref<2x8x32xf32, #tpu.memory_space<vmem>>, vector<2x8x32xf32>
    %1 = vector.shape_cast %0 : vector<2x8x32xf32> to vector<16x32xf32>
    %c0_2 = arith.constant 0 : index
    %c0_3 = arith.constant 0 : index
    %2 = vector.load %arg2[%c0_2, %c0_3] : memref<32x32xf32, #tpu.memory_space<vmem>>, vector<32x32xf32>
    %cst = arith.constant dense<0.000000e+00> : vector<16x32xf32>
    %3 = tpu.matmul %1, %2, %cst {dimension_numbers = #tpu.dot_dimension_numbers<[1], [0], [0], [1], [0, 0, 1, 1], [], []>} : vector<16x32xf32>, vector<32x32xf32>, vector<16x32xf32> -> vector<16x32xf32>
    %c0_4 = arith.constant 0 : index
    %c0_5 = arith.constant 0 : index
    %4 = vector.load %arg3[%c0_4, %c0_5] : memref<1x32xf32, #tpu.memory_space<vmem>>, vector<1x32xf32>
    %5 = vector.broadcast %4 : vector<1x32xf32> to vector<16x32xf32>
    %6 = arith.addf %3, %5 : vector<16x32xf32>
    %7 = math.tanh %6 : vector<16x32xf32>
    %c0_6 = arith.constant 0 : index
    %c0_7 = arith.constant 0 : index
    %8 = vector.load %arg4[%c0_6, %c0_7] : memref<1x32xf32, #tpu.memory_space<vmem>>, vector<1x32xf32>
    %9 = vector.broadcast %8 : vector<1x32xf32> to vector<16x32xf32>
    %10 = arith.mulf %7, %9 : vector<16x32xf32>
    %cst_8 = arith.constant dense<0.000000e+00> : vector<16xf32>
    %11 = vector.multi_reduction <add>, %10, %cst_8 [1] : vector<16x32xf32> to vector<16xf32>
    %12 = vector.shape_cast %11 : vector<16xf32> to vector<16x1xf32>
    %13 = vector.shape_cast %12 : vector<16x1xf32> to vector<2x8x1xf32>
    %cst_9 = arith.constant dense<0xFF800000> : vector<2x1xf32>
    %14 = vector.multi_reduction <maximumf>, %13, %cst_9 [1] : vector<2x8x1xf32> to vector<2x1xf32>
    %15 = vector.shape_cast %14 : vector<2x1xf32> to vector<2x1x1xf32>
    %16 = vector.broadcast %15 : vector<2x1x1xf32> to vector<2x8x1xf32>
    %17 = arith.subf %13, %16 : vector<2x8x1xf32>
    %18 = math.exp %17 : vector<2x8x1xf32>
    %19 = vector.broadcast %18 : vector<2x8x1xf32> to vector<2x8x32xf32>
    %20 = arith.mulf %19, %0 : vector<2x8x32xf32>
    %cst_10 = arith.constant dense<0.000000e+00> : vector<2x32xf32>
    %21 = vector.multi_reduction <add>, %20, %cst_10 [1] : vector<2x8x32xf32> to vector<2x32xf32>
    %cst_11 = arith.constant dense<0.000000e+00> : vector<2x1xf32>
    %22 = vector.multi_reduction <add>, %18, %cst_11 [1] : vector<2x8x1xf32> to vector<2x1xf32>
    %23 = tpu.reciprocal %22 : vector<2x1xf32> -> vector<2x1xf32>
    %24 = vector.broadcast %23 : vector<2x1xf32> to vector<2x32xf32>
    %25 = arith.mulf %21, %24 : vector<2x32xf32>
    %c0_12 = arith.constant 0 : index
    %c0_13 = arith.constant 0 : index
    %26 = vector.load %arg5[%c0_12, %c0_13] : memref<2x32xf32, #tpu.memory_space<vmem>>, vector<2x32xf32>
    tpu.vector_store %arg5[%c0_12, %c0_13], %25 {strides = array<i32>} : memref<2x32xf32, #tpu.memory_space<vmem>>, vector<2x32xf32>,
    return
  }
  func.func @transform_0(%arg0: i32) -> (i32, i32, i32) {
    %c0_i32 = arith.constant 0 : i32
    %c0_i32_0 = arith.constant 0 : i32
    %c0_i32_1 = arith.constant 0 : i32
    return %arg0, %c0_i32, %c0_i32_0 : i32, i32, i32
  }
  func.func @transform_1(%arg0: i32) -> (i32, i32) {
    %c0_i32 = arith.constant 0 : i32
    %c0_i32_0 = arith.constant 0 : i32
    %c0_i32_1 = arith.constant 0 : i32
    return %c0_i32, %c0_i32_0 : i32, i32
  }
  func.func @transform_2(%arg0: i32) -> (i32, i32) {
    %c0_i32 = arith.constant 0 : i32
    %c0_i32_0 = arith.constant 0 : i32
    %c0_i32_1 = arith.constant 0 : i32
    return %c0_i32, %c0_i32_0 : i32, i32
  }
  func.func @transform_3(%arg0: i32) -> (i32, i32) {
    %c0_i32 = arith.constant 0 : i32
    %c0_i32_0 = arith.constant 0 : i32
    %c0_i32_1 = arith.constant 0 : i32
    return %c0_i32, %c0_i32_0 : i32, i32
  }
  func.func @transform_4(%arg0: i32) -> (i32, i32) {
    %c0_i32 = arith.constant 0 : i32
    %c0_i32_0 = arith.constant 0 : i32
    return %arg0, %c0_i32 : i32, i32
  }
}

</mosaic_0001>

<llo_original>
// kernel: tpu_custom_call.1
$region0: #{tpu_custom_call.1}
  #allocation0 [shape = 'u32[]', space=smem, size = 0x4, offset = 0x4, fixed_abs, tag = 'smem constant byte address 0x4 - core index']
  #allocation1 [shape = 'u32[144,128]{1,0:T(1,128)}', space=vmem, size = 0x12000, scoped, tag = 'internal scratch']
  %s0 = inlined_call_operand.hbm [shape: f32[2,8,32], index: 0, kind: input, shape index: {}]
  %s1 = inlined_call_operand.hbm [shape: f32[32,32], index: 1, kind: input, shape index: {}]
  %s2 = inlined_call_operand.vmem [shape: f32[1,32], index: 2, kind: input, shape index: {}]
  %s3 = inlined_call_operand.vmem [shape: f32[1,32], index: 3, kind: input, shape index: {}]
  %s4 = inlined_call_operand.hbm [shape: f32[2,32], index: 4, kind: output, shape index: {}]
  %s5 = sld [smem:[#allocation0]]
  $region34: #{tpu_custom_call.1} parent=0
    _
  %s7 = ssub.s32 1, %s5
  %s8 = scalar_select 0, %s7, %s5
  $region1: #{tpu_custom_call.1} parent=0
    #allocation2 [shape = 'u8[8192]{0}', space=vmem, size = 0x2000, scoped, tag = 'input window, operand 0, single buffered']
    #allocation3 [shape = 's32[1]{0}', space=sflag, size = 0x4, scoped, tag = 'scoped memory for tpu_custom_call.1']
    #allocation4 [shape = 's32[1]{0}', space=sflag, size = 0x4, scoped, tag = 'scoped memory for tpu_custom_call.1']
    #allocation5 [shape = 'u8[16384]{0}', space=vmem, size = 0x4000, scoped, tag = 'input window, operand 1, single buffered']
    #allocation6 [shape = 's32[1]{0}', space=sflag, size = 0x4, scoped, tag = 'scoped memory for tpu_custom_call.1']
    #allocation7 [shape = 'u8[1024]{0}', space=vmem, size = 0x400, scoped, tag = 'output window, operand 0, single buffered']
    %9 = vsyncpa [#allocation3], 0
    %10 = vsyncpa [#allocation6], 0
    %11 = vsyncpa [#allocation4], 0
    // Predicated region
    $region2: #{tpu_custom_call.1} parent=1 // pred_check
      _
    $region3: #{tpu_custom_call.1} parent=1 // pred_check_branch
      %13 = sbr.rel (0) target = $region5
    $region4: #{tpu_custom_call.1} parent=1 // pred_region
      %s15 = ssub.s32 256, 256
      %16 = vsyncadd [#allocation3], %s15
      %s17 = sshll.u32 [#allocation2], 4
      %s18 = int_to_ptr.vmem [resolvable:$true] %s17
      %23 = dma.hbm_to_vmem [thread:$0]  %s0, 256, %s18, [#allocation3], 128, 128, 8
    $region5: #{tpu_custom_call.1} parent=1 // pred_fallthru
      _
    // Predicated region
    $region6: #{tpu_custom_call.1} parent=1 // pred_check
      _
    $region7: #{tpu_custom_call.1} parent=1 // pred_check_branch
      %25 = sbr.rel (0) target = $region9
    $region8: #{tpu_custom_call.1} parent=1 // pred_region
      %s27 = ssub.s32 512, 512
      %28 = vsyncadd [#allocation6], %s27
      %s29 = sshll.u32 [#allocation5], 4
      %s30 = int_to_ptr.vmem [resolvable:$true] %s29
      %35 = dma.hbm_to_vmem [thread:$0]  %s1, 512, %s30, [#allocation6], 128, 128, 8
    $region9: #{tpu_custom_call.1} parent=1 // pred_fallthru
      _
    // Predicated region
    $region10: #{tpu_custom_call.1} parent=1 // pred_check
      _
    $region11: #{tpu_custom_call.1} parent=1 // pred_check_branch
      %37 = sbr.rel (0) target = $region13
    $region12: #{tpu_custom_call.1} parent=1 // pred_region
      _
    $region13: #{tpu_custom_call.1} parent=1 // pred_fallthru
      _
    // Predicated region
    $region14: #{tpu_custom_call.1} parent=1 // pred_check
      _
    $region15: #{tpu_custom_call.1} parent=1 // pred_check_branch
      %39 = sbr.rel (0) target = $region17
    $region16: #{tpu_custom_call.1} parent=1 // pred_region
      _
    $region17: #{tpu_custom_call.1} parent=1 // pred_fallthru
      _
    // Predicated region
    $region18: #{tpu_custom_call.1} parent=1 // pred_check
      _
    $region19: #{tpu_custom_call.1} parent=1 // pred_check_branch
      %41 = sbr.rel (0) target = $region21
    $region20: #{tpu_custom_call.1} parent=1 // pred_region
      %42 = dma.done [#allocation3], 256
    $region21: #{tpu_custom_call.1} parent=1 // pred_fallthru
      _
    // Predicated region
    $region22: #{tpu_custom_call.1} parent=1 // pred_check
      _
    $region23: #{tpu_custom_call.1} parent=1 // pred_check_branch
      %44 = sbr.rel (0) target = $region25
    $region24: #{tpu_custom_call.1} parent=1 // pred_region
      %45 = dma.done [#allocation6], 512
    $region25: #{tpu_custom_call.1} parent=1 // pred_fallthru
      _
    %v46 = vld [vmem:[#allocation2] sm:$0xff]
    %v47 = vld [vmem:[#allocation2 + $0x8] sm:$0xff]
    %v48 = vld [vmem:[#allocation5] sm:$0xff]
    %v49 = vld [vmem:[#allocation5 + $0x8] sm:$0xff]
    %v50 = vld [vmem:[#allocation5 + $0x10] sm:$0xff]
    %v51 = vld [vmem:[#allocation5 + $0x18] sm:$0xff]
    %v52 = vld [vmem:[%s2] sm:$0x1]
    %v54 = vlaneseq
    %v55 = vshrl.u32 %v54, 7
    %v56 = vsub.s32 0, %v55
    %v57 = vrot.slane %v52, %v56
    %vm59 = vcmask 261120
    %v61 = vsel %vm59, %v46, 0
    %v64 = vsel %vm59, %v47, 0
    %66 = vmatprep.subr.mxu0 0.0
    %67 = vmatpush1.msra.mxu0 %v48
    %68 = vmatprep.subr.mxu0 0.0
    %69 = vmatpush1.msra.mxu0 %v49
    %70 = vmatprep.subr.mxu0 0.0
    %71 = vmatpush1.msra.mxu0 %v50
    %72 = vmatprep.subr.mxu0 0.0
    %73 = vmatpush1.msra.mxu0 %v51
    %74 = vmatprep.subr.mxu0 0.0
    %75 = vmatpush1.msra.mxu0 0.0
    %76 = vmatprep.subr.mxu0 0.0
    %77 = vmatpush1.msra.mxu0 0.0
    %78 = vmatprep.subr.mxu0 0.0
    %79 = vmatpush1.msra.mxu0 0.0
    %80 = vmatprep.subr.mxu0 0.0
    %81 = vmatpush1.msra.mxu0 0.0
    %82 = vmatprep.subr.mxu0 0.0
    %83 = vmatpush1.msra.mxu0 0.0
    %84 = vmatprep.subr.mxu0 0.0
    %85 = vmatpush1.msra.mxu0 0.0
    %86 = vmatprep.subr.mxu0 0.0
    %87 = vmatpush1.msra.mxu0 0.0
    %88 = vmatprep.subr.mxu0 0.0
    %89 = vmatpush1.msra.mxu0 0.0
    %90 = vmatprep.subr.mxu0 0.0
    %91 = vmatpush1.msra.mxu0 0.0
    %92 = vmatprep.subr.mxu0 0.0
    %93 = vmatpush1.msra.mxu0 0.0
    %94 = vmatprep.subr.mxu0 0.0
    %95 = vmatpush1.msra.mxu0 0.0
    %96 = vmatprep.subr.mxu0 0.0
    %97 = vmatpush1.msra.mxu0 0.0
    %98 = vmatprep.subr.mxu0 0.0
    %99 = vmatpush1.msra.mxu0 0.0
    %100 = vmatprep.subr.mxu0 0.0
    %101 = vmatpush1.msra.mxu0 0.0
    %102 = vmatprep.subr.mxu0 0.0
    %103 = vmatpush1.msra.mxu0 0.0
    %104 = vmatprep.subr.mxu0 0.0
    %105 = vmatpush1.msra.mxu0 0.0
    %106 = vmatprep.subr.mxu0 0.0
    %107 = vmatpush1.msra.mxu0 0.0
    %108 = vmatprep.subr.mxu0 0.0
    %109 = vmatpush1.msra.mxu0 0.0
    %110 = vmatprep.subr.mxu0 0.0
    %111 = vmatpush1.msra.mxu0 0.0
    %112 = vmatprep.subr.mxu0 0.0
    %113 = vmatpush1.msra.mxu0 0.0
    %114 = vmatprep.subr.mxu0 0.0
    %115 = vmatpush1.msra.mxu0 0.0
    %116 = vmatprep.subr.mxu0 0.0
    %117 = vmatpush1.msra.mxu0 0.0
    %118 = vmatprep.subr.mxu0 0.0
    %119 = vmatpush1.msra.mxu0 0.0
    %120 = vmatprep.subr.mxu0 0.0
    %121 = vmatpush1.msra.mxu0 0.0
    %122 = vmatprep.subr.mxu0 0.0
    %123 = vmatpush1.msra.mxu0 0.0
    %124 = vmatprep.subr.mxu0 0.0
    %125 = vmatpush1.msra.mxu0 0.0
    %126 = vmatprep.subr.mxu0 0.0
    %127 = vmatpush1.msra.mxu0 0.0
    %128 = vmatprep.subr.mxu0 0.0
    %129 = vmatpush1.msra.mxu0 0.0
    %130 = vmatprep.mubr.f32.mxu0 0.0
    %131 = vmatmul.mubr.f32.gmra.mrb[0].mxu0 %v61
    %v132 = vpop.f32.mrb[0].mxu0
    %v133 = vadd.f32 %v57, %v132
    %v134 = vpop.f32.mrb[0].mxu0
    %135 = vmatprep.mubr.f32.mxu0 0.0
    %136 = vmatmul.mubr.f32.gmra.mrb[0].mxu0 %v64
    %v137 = vpop.f32.mrb[0].mxu0
    %v138 = vadd.f32 %v57, %v137
    %v139 = vpop.f32.mrb[0].mxu0
    %140 = vdwg.mxu0
    %v141 = vtanh.pop %v133
    %v142 = vtanh.pop %v138
    %v143 = vld [vmem:[%s3] sm:$0x1]
    %v145 = vlaneseq
    %v146 = vshrl.u32 %v145, 7
    %v147 = vsub.s32 0, %v146
    %v148 = vrot.slane %v143, %v147
    %v150 = vmul.f32 %v141, %v148
    %v151 = vmul.f32 %v142, %v148
    %v152 = vsel %vm59, %v150, 0.0
    %153 = vadd.xlane.f32.xlu0 %v152
    %v154 = vpop.xlane.xlu0 %153
    %v155 = vsel %vm59, %v151, 0.0
    %156 = vadd.xlane.f32.xlu0 %v155
    %v157 = vpop.xlane.xlu0 %156
    %v158 = vrot.slane %v154, 4
    %v159 = vmax.f32 %v154, %v158
    %v160 = vrot.slane %v159, 2
    %v161 = vmax.f32 %v159, %v160
    %v162 = vrot.slane %v161, 1
    %v163 = vmax.f32 %v161, %v162
    %v164 = vrot.slane %v157, 4
    %v165 = vmax.f32 %v157, %v164
    %v166 = vrot.slane %v165, 2
    %v167 = vmax.f32 %v165, %v166
    %v168 = vrot.slane %v167, 1
    %v169 = vmax.f32 %v167, %v168
    %v170 = vsub.f32 %v154, %v163
    %v171 = vsub.f32 %v157, %v169
    %v172 = vmul.f32 %v170, 1.442695
    %v173 = vpow.pop %v172
    %v174 = vmul.f32 %v171, 1.442695
    %v175 = vpow.pop %v174
    %v176 = vmul.f32 %v173, %v46
    %v177 = vmul.f32 %v175, %v47
    %v178 = vsel %vm59, %v176, 0.0
    %v179 = vrot.slane %v178, 4
    %v180 = vadd.f32 %v178, %v179
    %v181 = vrot.slane %v180, 2
    %v182 = vadd.f32 %v180, %v181
    %v183 = vrot.slane %v182, 1
    %v184 = vadd.f32 %v182, %v183
    %v185 = vsel %vm59, %v177, 0.0
    %v186 = vrot.slane %v185, 4
    %v187 = vadd.f32 %v185, %v186
    %v188 = vrot.slane %v187, 2
    %v189 = vadd.f32 %v187, %v188
    %v190 = vrot.slane %v189, 1
    %v191 = vadd.f32 %v189, %v190
    %v192 = vrot.slane %v173, 4
    %v193 = vadd.f32 %v173, %v192
    %v194 = vrot.slane %v193, 2
    %v195 = vadd.f32 %v193, %v194
    %v196 = vrot.slane %v195, 1
    %v197 = vadd.f32 %v195, %v196
    %v198 = vrot.slane %v175, 4
    %v199 = vadd.f32 %v175, %v198
    %v200 = vrot.slane %v199, 2
    %v201 = vadd.f32 %v199, %v200
    %v202 = vrot.slane %v201, 1
    %v203 = vadd.f32 %v201, %v202
    %v204 = vrcp.pop %v197
    %v205 = vrcp.pop %v203
    %v206 = vmul.f32 %v184, %v204
    %v207 = vmul.f32 %v191, %v205
    %vm210 = vcmask 1041409
    %v211 = vsel %vm210, %v207, %v206
    %vm213 = vcmask 254976
    %214 = vst.msk [vmem:[#allocation7] sm:$0x3] %vm213, %v211
    // Predicated region
    $region26: #{tpu_custom_call.1} parent=1 // pred_check
      _
    $region27: #{tpu_custom_call.1} parent=1 // pred_check_branch
      %216 = sbr.rel (0) target = $region29
    $region28: #{tpu_custom_call.1} parent=1 // pred_region
      %s218 = ssub.s32 32, 32
      %219 = vsyncadd [#allocation4], %s218
      %s221 = sshll.u32 [#allocation7], 4
      %s222 = int_to_ptr.vmem [resolvable:$true] %s221
      %224 = dma.vmem_to_hbm [thread:$0]  %s222, 32, %s4, [#allocation4]
    $region29: #{tpu_custom_call.1} parent=1 // pred_fallthru
      _
    // Predicated region
    $region30: #{tpu_custom_call.1} parent=1 // pred_check
      _
    $region31: #{tpu_custom_call.1} parent=1 // pred_check_branch
      %226 = sbr.rel (0) target = $region33
    $region32: #{tpu_custom_call.1} parent=1 // pred_region
      %227 = dma.done [#allocation4], 32
    $region33: #{tpu_custom_call.1} parent=1 // pred_fallthru
      _
    %228 = vsyncpa [#allocation3], 1
    %229 = vsyncpa [#allocation6], 1
    %230 = vsyncpa [#allocation4], 1

</llo_original>
